<compile_context>
chip_gen: v7x
topology: tpu7x:2x2x1
jax: 0.10.0
libtpu: 0.0.40
codegen_flags: <defaults>
</compile_context>

<pallas_src>
import functools
import math

import jax
import jax.numpy as jnp
import numpy as np
from jax import lax
from jax.experimental import pallas as pl
from jax.experimental.pallas import tpu as pltpu


# ----------------------------------------------------------------------------
# Bicubic interpolation matrix for torch.nn.Upsample(scale_factor=2,
# mode='bicubic', align_corners=False) along ONE axis (A=-0.75, border clamp).
# ----------------------------------------------------------------------------
def _cubic1(x, A):
    return ((A + 2.0) * x - (A + 3.0)) * x * x + 1.0


def _cubic2(x, A):
    return ((A * x - 5.0 * A) * x + 8.0 * A) * x - 4.0 * A


@functools.lru_cache(maxsize=None)
def _bicubic_matrix_np(in_size, scale=2, A=-0.75):
    out_size = in_size * scale
    M = np.zeros((out_size, in_size), np.float32)
    for i in range(out_size):
        src = (i + 0.5) / scale - 0.5
        f = int(math.floor(src))
        t = src - f
        w = [_cubic2(t + 1.0, A), _cubic1(t, A), _cubic1(1.0 - t, A), _cubic2(2.0 - t, A)]
        for k in range(4):
            idx = min(max(f - 1 + k, 0), in_size - 1)
            M[i, idx] += w[k]
    return M


# ----------------------------------------------------------------------------
# Helpers
# ----------------------------------------------------------------------------
_VMEM_LIMIT = 48 * 1024 * 1024


def _cparams(*sem):
    return pltpu.CompilerParams(dimension_semantics=sem,
                                vmem_limit_bytes=_VMEM_LIMIT)


def _pick_tile(n, max_tile, mult):
    """Largest divisor of n that is a multiple of `mult` and <= max_tile (else n)."""
    if n <= max_tile:
        return n
    t = max_tile - (max_tile % mult)
    while t >= mult:
        if n % t == 0:
            return t
        t -= mult
    return n


# ----------------------------------------------------------------------------
# Kernel 1: 1x1 conv, channel-first layout (lanes = H*W -> lane dense).
# ----------------------------------------------------------------------------
def _conv1x1_cf_kernel(x_ref, w_ref, b_ref, o_ref):
    # x_ref: (1, Cin, HWT) f32   w_ref: (Ch, Cin) bf16   b_ref: (Ch, 1) f32
    x = x_ref[0].astype(jnp.bfloat16)
    y = jnp.dot(w_ref[...], x, preferred_element_type=jnp.float32)
    o_ref[0] = (y + b_ref[...]).astype(o_ref.dtype)


def conv1x1_channel_first(x, w, b):
    # x: (N, Cin, HW) -> (N, Ch, HW) bf16
    N, Cin, HW = x.shape
    Ch = w.shape[0]
    hwt = _pick_tile(HW, 2048, 128)
    return pl.pallas_call(
        _conv1x1_cf_kernel,
        out_shape=jax.ShapeDtypeStruct((N, Ch, HW), jnp.bfloat16),
        grid=(N, HW // hwt),
        in_specs=[
            pl.BlockSpec((1, Cin, hwt), lambda n, t: (n, 0, t)),
            pl.BlockSpec((Ch, Cin), lambda n, t: (0, 0)),
            pl.BlockSpec((Ch, 1), lambda n, t: (0, 0)),
        ],
        out_specs=pl.BlockSpec((1, Ch, hwt), lambda n, t: (n, 0, t)),
        compiler_params=_cparams("parallel", "parallel"),
    )(x, w, b)


# ----------------------------------------------------------------------------
# Kernel 2: separable bicubic x2 upsample, channel-first layout.
# ----------------------------------------------------------------------------
def _upsample2x_kernel(x_ref, uh_ref, uwt_ref, o_ref):
    # x_ref: (1, Cb, H, W) bf16   uh_ref: (2H, H) bf16   uwt_ref: (W, 2W) bf16
    # o_ref: (1, Cb*2H, 2W) bf16
    x = x_ref[0].astype(jnp.bfloat16)                     # (Cb, H, W)
    cb, h, w = x.shape
    th = uh_ref.shape[0]
    # H-pass: per-channel batched matmul on the MXU.
    uhb = jnp.broadcast_to(uh_ref[...], (cb, th, h))
    t = lax.dot_general(uhb, x, (((2,), (1,)), ((0,), (0,))),
                        preferred_element_type=jnp.float32)      # (Cb, 2H, W)
    # W-pass: plain 2-D matmul, lanes = 2W.
    t2 = t.astype(jnp.bfloat16).reshape(cb * th, w)
    s = jnp.dot(t2, uwt_ref[...], preferred_element_type=jnp.float32)   # (Cb*2H, 2W)
    o_ref[0] = s.astype(o_ref.dtype)


def upsample2x_channel_first(x, uh, uwt):
    # x: (N, C, H, W) -> (N, C*2H, 2W) bf16  (== NCHW (N, C, 2H, 2W) flattened)
    N, C, H, W = x.shape
    H2, W2 = uh.shape[0], uwt.shape[1]
    cb = _pick_tile(C, 128, 1)
    return pl.pallas_call(
        _upsample2x_kernel,
        out_shape=jax.ShapeDtypeStruct((N, C * H2, W2), jnp.bfloat16),
        grid=(N, C // cb),
        in_specs=[
            pl.BlockSpec((1, cb, H, W), lambda n, c: (n, c, 0, 0)),
            pl.BlockSpec((H2, H), lambda n, c: (0, 0)),
            pl.BlockSpec((W, W2), lambda n, c: (0, 0)),
        ],
        out_specs=pl.BlockSpec((1, cb * H2, W2), lambda n, c: (n, c, 0)),
        compiler_params=_cparams("parallel", "parallel"),
    )(x, uh, uwt)


# ----------------------------------------------------------------------------
# Kernel 3: 3x3 conv over the (VMEM-only) concat of two channel halves,
# fused bias + per-batch BatchNorm partial sums.
# ----------------------------------------------------------------------------
def _conv3x3_cat_stats_kernel(xa_ref, xb_ref, wa_ref, wb_ref, b_ref,
                              o_ref, st_ref, pada_ref, padb_ref,
                              *, H, W, Ca, Cb, Cout):
    # Zero padding lives in VMEM scratch (re-zeroed per step: scratch is per-core).
    pada_ref[...] = jnp.zeros_like(pada_ref)
    padb_ref[...] = jnp.zeros_like(padb_ref)
    pada_ref[1:H + 1, 1:W + 1, :] = xa_ref[0].astype(jnp.bfloat16)
    padb_ref[1:H + 1, 1:W + 1, :] = xb_ref[0].astype(jnp.bfloat16)

    acc = jnp.zeros((H * W, Cout), jnp.float32)
    for dx in range(3):
        # One sublane-shifted window per dx (3 relayouts, not 9); the dy shifts
        # below are free major-dim slices of the loaded value.
        xsa = pada_ref[:, dx:dx + W, :]                  # (H+2, W, Ca)
        xsb = padb_ref[:, dx:dx + W, :]                  # (H+2, W, Cb)
        for dy in range(3):
            pa = xsa[dy:dy + H].reshape(H * W, Ca)
            pb = xsb[dy:dy + H].reshape(H * W, Cb)
            acc = acc + jnp.dot(pa, wa_ref[dy * 3 + dx],
                                preferred_element_type=jnp.float32)
            acc = acc + jnp.dot(pb, wb_ref[dy * 3 + dx],
                                preferred_element_type=jnp.float32)
    y = acc + b_ref[...]
    o_ref[0] = y
    st_ref[0, 0:1, :] = jnp.sum(y, axis=0, keepdims=True)
    st_ref[0, 1:2, :] = jnp.sum(y * y, axis=0, keepdims=True)


def conv3x3_concat_stats(xa, xb, wa, wb, b):
    # xa/xb: (N, H, W, Ca/Cb) bf16 ; wa/wb: (9, Ca/Cb, Cout) bf16 ; b: (1, Cout) f32
    N, H, W, Ca = xa.shape
    Cb = xb.shape[-1]
    Cout = wa.shape[-1]
    kern = functools.partial(_conv3x3_cat_stats_kernel, H=H, W=W, Ca=Ca, Cb=Cb, Cout=Cout)
    return pl.pallas_call(
        kern,
        out_shape=(jax.ShapeDtypeStruct((N, H * W, Cout), jnp.float32),
                   jax.ShapeDtypeStruct((N, 2, Cout), jnp.float32)),
        grid=(N,),
        in_specs=[
            pl.BlockSpec((1, H, W, Ca), lambda n: (n, 0, 0, 0)),
            pl.BlockSpec((1, H, W, Cb), lambda n: (n, 0, 0, 0)),
            pl.BlockSpec((9, Ca, Cout), lambda n: (0, 0, 0)),
            pl.BlockSpec((9, Cb, Cout), lambda n: (0, 0, 0)),
            pl.BlockSpec((1, Cout), lambda n: (0, 0)),
        ],
        out_specs=(pl.BlockSpec((1, H * W, Cout), lambda n: (n, 0, 0)),
                   pl.BlockSpec((1, 2, Cout), lambda n: (n, 0, 0))),
        scratch_shapes=[pltpu.VMEM((H + 2, W + 2, Ca), jnp.bfloat16),
                        pltpu.VMEM((H + 2, W + 2, Cb), jnp.bfloat16)],
        compiler_params=_cparams("parallel"),
    )(xa, xb, wa, wb, b)


# ----------------------------------------------------------------------------
# Kernel 4: 3x3 conv with BatchNorm+ReLU fused onto its input, plus bias and
# per-batch BatchNorm partial sums of its own output.
# ----------------------------------------------------------------------------
def _conv3x3_bnrelu_stats_kernel(x_ref, sc_ref, w_ref, b_ref, o_ref, st_ref, pad_ref,
                                 *, H, W, C, Cout):
    pad_ref[...] = jnp.zeros_like(pad_ref)
    # BN (precomputed scale/shift) + ReLU applied on the fly -> no extra HBM pass.
    xn = jnp.maximum(x_ref[0] * sc_ref[0:1, :] + sc_ref[1:2, :], 0.0)     # (H*W, C) f32
    pad_ref[1:H + 1, 1:W + 1, :] = xn.reshape(H, W, C).astype(jnp.bfloat16)

    acc = jnp.zeros((H * W, Cout), jnp.float32)
    for dx in range(3):
        xs = pad_ref[:, dx:dx + W, :]                    # (H+2, W, C)
        for dy in range(3):
            patch = xs[dy:dy + H].reshape(H * W, C)
            acc = acc + jnp.dot(patch, w_ref[dy * 3 + dx],
                                preferred_element_type=jnp.float32)
    y = acc + b_ref[...]
    o_ref[0] = y
    st_ref[0, 0:1, :] = jnp.sum(y, axis=0, keepdims=True)
    st_ref[0, 1:2, :] = jnp.sum(y * y, axis=0, keepdims=True)


def conv3x3_bnrelu_stats(x, sc, w, b, H, W):
    # x: (N, H*W, C) f32 raw conv-1 output; sc: (2, C) [scale; shift]
    N, HW, C = x.shape
    Cout = w.shape[-1]
    kern = functools.partial(_conv3x3_bnrelu_stats_kernel, H=H, W=W, C=C, Cout=Cout)
    return pl.pallas_call(
        kern,
        out_shape=(jax.ShapeDtypeStruct((N, HW, Cout), jnp.float32),
                   jax.ShapeDtypeStruct((N, 2, Cout), jnp.float32)),
        grid=(N,),
        in_specs=[
            pl.BlockSpec((1, HW, C), lambda n: (n, 0, 0)),
            pl.BlockSpec((2, C), lambda n: (0, 0)),
            pl.BlockSpec((9, C, Cout), lambda n: (0, 0, 0)),
            pl.BlockSpec((1, Cout), lambda n: (0, 0)),
        ],
        out_specs=(pl.BlockSpec((1, HW, Cout), lambda n: (n, 0, 0)),
                   pl.BlockSpec((1, 2, Cout), lambda n: (n, 0, 0))),
        scratch_shapes=[pltpu.VMEM((H + 2, W + 2, C), jnp.bfloat16)],
        compiler_params=_cparams("parallel"),
    )(x, sc, w, b)


# ----------------------------------------------------------------------------
# Kernel 5: final BatchNorm + ReLU apply (tiled elementwise pass).
# ----------------------------------------------------------------------------
def _bn_relu_apply_kernel(x_ref, sc_ref, o_ref):
    o_ref[0] = jnp.maximum(x_ref[0] * sc_ref[0:1, :] + sc_ref[1:2, :], 0.0)


def bn_relu_apply(x, sc):
    N, HW, C = x.shape
    tr = _pick_tile(HW, 2048, 8)
    return pl.pallas_call(
        _bn_relu_apply_kernel,
        out_shape=jax.ShapeDtypeStruct((N, HW, C), jnp.float32),
        grid=(N, HW // tr),
        in_specs=[
            pl.BlockSpec((1, tr, C), lambda n, t: (n, t, 0)),
            pl.BlockSpec((2, C), lambda n, t: (0, 0)),
        ],
        out_specs=pl.BlockSpec((1, tr, C), lambda n, t: (n, t, 0)),
        compiler_params=_cparams("parallel", "parallel"),
    )(x, sc)


# ----------------------------------------------------------------------------
# Host-side BatchNorm statistics (tiny: reduces the (N, 2, C) partials).
# ----------------------------------------------------------------------------
def _bn_scale_shift(stats, gamma, beta, count, eps=1e-5):
    s = jnp.sum(stats[:, 0, :], axis=0)
    ss = jnp.sum(stats[:, 1, :], axis=0)
    mean = s / count
    var = jnp.maximum(ss / count - mean * mean, 0.0)     # biased var (train-mode BN)
    scale = gamma / jnp.sqrt(var + eps)
    shift = beta - mean * scale
    return jnp.stack([scale, shift], axis=0).astype(jnp.float32)   # (2, C)


# ----------------------------------------------------------------------------
# Up_Conv module
# ----------------------------------------------------------------------------
class UpConvPallas:
    """Forward of Up_Conv (train-mode BatchNorm with batch statistics)."""

    def __init__(self, in_channels, out_channels, key):
        half = in_channels // 2
        ks = jax.random.split(key, 6)
        # upsample-branch 1x1 conv, channel-first weight: (half, in)
        self.w_up = jax.random.normal(ks[0], (half, in_channels), jnp.float32) * 0.1
        self.b_up = jax.random.normal(ks[1], (half, 1), jnp.float32) * 0.1
        # Double_Conv conv-1 weight: (9, in, out), tap index = dy*3 + dx.
        # Channel order matches torch.cat((x2, x1_up)): [0:half] -> x2, [half:] -> x1_up.
        self.w1 = jax.random.normal(ks[2], (9, in_channels, out_channels), jnp.float32) * 0.1
        self.b1 = jax.random.normal(ks[3], (1, out_channels), jnp.float32) * 0.1
        self.g1 = jnp.ones((out_channels,), jnp.float32)
        self.be1 = jnp.zeros((out_channels,), jnp.float32)
        self.w2 = jax.random.normal(ks[4], (9, out_channels, out_channels), jnp.float32) * 0.1
        self.b2 = jax.random.normal(ks[5], (1, out_channels), jnp.float32) * 0.1
        self.g2 = jnp.ones((out_channels,), jnp.float32)
        self.be2 = jnp.zeros((out_channels,), jnp.float32)
        # bf16 matmul operands (MXU-native); conv-1 weight pre-split per concat half.
        self.w_up_b = self.w_up.astype(jnp.bfloat16)
        self.w1a_b = self.w1[:, :half, :].astype(jnp.bfloat16)
        self.w1b_b = self.w1[:, half:, :].astype(jnp.bfloat16)
        self.w2_b = self.w2.astype(jnp.bfloat16)
        self.in_channels = in_channels
        self.out_channels = out_channels
        self._up_mats = {}   # (H, W) -> (Uh, UwT) device arrays, built once

    def _bicubic_mats(self, H, W):
        key = (H, W)
        if key not in self._up_mats:
            self._up_mats[key] = (
                jnp.asarray(_bicubic_matrix_np(H), jnp.bfloat16),      # (2H, H)
                jnp.asarray(_bicubic_matrix_np(W).T, jnp.bfloat16),    # (W, 2W)
            )
        return self._up_mats[key]

    def __call__(self, x1, x2):
        # x1: (N, Cin, H, W) decoder feature; x2: (N, Cin//2, 2H, 2W) skip.
        N, Cin, H, W = x1.shape
        half = Cin // 2
        H2, W2 = 2 * H, 2 * W
        Cout = self.out_channels
        uh, uwt = self._bicubic_mats(H, W)

        # ---- upsample branch: 1x1 conv, then separable bicubic x2 -----------
        # (The 1x1 conv commutes exactly with the bicubic upsample because every
        #  interpolation row sums to 1, so both run on the small H x W tensor.)
        y = conv1x1_channel_first(x1.reshape(N, Cin, H * W), self.w_up_b, self.b_up)
        y = upsample2x_channel_first(y.reshape(N, half, H, W), uh, uwt)
        y1 = y.reshape(N, half, H2, W2).transpose(0, 2, 3, 1)          # (N,H2,W2,half) bf16

        # ---- decoder: Double_Conv (concat fused into conv-1, BN two-pass) ---
        x2n = jnp.transpose(x2, (0, 2, 3, 1)).astype(jnp.bfloat16)     # (N,H2,W2,half)
        h1, st1 = conv3x3_concat_stats(x2n, y1, self.w1a_b, self.w1b_b, self.b1)
        sc1 = _bn_scale_shift(st1, self.g1, self.be1, N * H2 * W2)
        h2, st2 = conv3x3_bnrelu_stats(h1, sc1, self.w2_b, self.b2, H2, W2)
        sc2 = _bn_scale_shift(st2, self.g2, self.be2, N * H2 * W2)
        out = bn_relu_apply(h2, sc2)                                   # (N, H2*W2, Cout)

        return out.reshape(N, H2, W2, Cout).transpose(0, 3, 1, 2)      # back to NCHW


if __name__ == "__main__":
    in_channels, out_channels = 8, 4
    N, H, W = 2, 8, 8

    key = jax.random.PRNGKey(0)
    k_x1, k_x2, k_params = jax.random.split(key, 3)
    x1 = jax.random.normal(k_x1, (N, in_channels, H, W), jnp.float32)
    x2 = jax.random.normal(k_x2, (N, in_channels // 2, 2 * H, 2 * W), jnp.float32)

    model = UpConvPallas(in_channels, out_channels, k_params)
    out = jax.block_until_ready(model(x1, x2))

    assert out.shape == (N, out_channels, 2 * H, 2 * W), out.shape
    assert bool(jnp.all(jnp.isfinite(out)))
    print("KERNEL_OK")
</pallas_src>

<mosaic_0001>
module attributes {stable_mosaic.version = 11 : i64} {
  func.func @_conv1x1_cf_kernel(%arg0: i32, %arg1: i32, %arg2: memref<1x8x64xf32, #tpu.memory_space<vmem>>, %arg3: memref<4x8xbf16, #tpu.memory_space<vmem>>, %arg4: memref<4x1xf32, #tpu.memory_space<vmem>>, %arg5: memref<1x4x64xbf16, #tpu.memory_space<vmem>>) attributes {dimension_semantics = [#tpu.dimension_semantics<parallel>, #tpu.dimension_semantics<parallel>], iteration_bounds = array<i64: 2, 1>, scalar_prefetch = 0 : i64, scratch_operands = 0 : i64, tpu.core_type = #tpu.core_type<tc>, window_params = [{transform_indices = @transform_0, window_bounds = array<i64: 1, 8, 64>}, {pipeline_mode = #tpu.pipeline_mode<synchronous>, transform_indices = @transform_1, window_bounds = array<i64: 4, 8>}, {pipeline_mode = #tpu.pipeline_mode<synchronous>, transform_indices = @transform_2, window_bounds = array<i64: 4, 1>}, {transform_indices = @transform_3, window_bounds = array<i64: 1, 4, 64>}]} {
    %c0 = arith.constant 0 : index
    %c0_0 = arith.constant 0 : index
    %c0_1 = arith.constant 0 : index
    %0 = vector.load %arg2[%c0, %c0_0, %c0_1] : memref<1x8x64xf32, #tpu.memory_space<vmem>>, vector<1x8x64xf32>
    %1 = vector.shape_cast %0 : vector<1x8x64xf32> to vector<8x64xf32>
    %2 = arith.truncf %1 : vector<8x64xf32> to vector<8x64xbf16>
    %c0_2 = arith.constant 0 : index
    %c0_3 = arith.constant 0 : index
    %3 = vector.load %arg3[%c0_2, %c0_3] : memref<4x8xbf16, #tpu.memory_space<vmem>>, vector<4x8xbf16>
    %cst = arith.constant dense<0.000000e+00> : vector<4x64xf32>
    %4 = tpu.matmul %3, %2, %cst {dimension_numbers = #tpu.dot_dimension_numbers<[1], [0], [0], [1], [0, 0, 1, 1], [], []>} : vector<4x8xbf16>, vector<8x64xbf16>, vector<4x64xf32> -> vector<4x64xf32>
    %c0_4 = arith.constant 0 : index
    %c0_5 = arith.constant 0 : index
    %5 = vector.load %arg4[%c0_4, %c0_5] : memref<4x1xf32, #tpu.memory_space<vmem>>, vector<4x1xf32>
    %6 = vector.broadcast %5 : vector<4x1xf32> to vector<4x64xf32>
    %7 = arith.addf %4, %6 : vector<4x64xf32>
    %8 = arith.truncf %7 : vector<4x64xf32> to vector<4x64xbf16>
    %c0_6 = arith.constant 0 : index
    %c0_7 = arith.constant 0 : index
    %c0_8 = arith.constant 0 : index
    %9 = vector.load %arg5[%c0_6, %c0_7, %c0_8] : memref<1x4x64xbf16, #tpu.memory_space<vmem>>, vector<1x4x64xbf16>
    %10 = vector.shape_cast %9 : vector<1x4x64xbf16> to vector<4x64xbf16>
    %11 = vector.shape_cast %8 : vector<4x64xbf16> to vector<1x4x64xbf16>
    tpu.vector_store %arg5[%c0_6, %c0_7, %c0_8], %11 {strides = array<i32>} : memref<1x4x64xbf16, #tpu.memory_space<vmem>>, vector<1x4x64xbf16>,
    return
  }
  func.func @transform_0(%arg0: i32, %arg1: i32) -> (i32, i32, i32) {
    %c0_i32 = arith.constant 0 : i32
    %c0_i32_0 = arith.constant 0 : i32
    return %arg0, %c0_i32, %arg1 : i32, i32, i32
  }
  func.func @transform_1(%arg0: i32, %arg1: i32) -> (i32, i32) {
    %c0_i32 = arith.constant 0 : i32
    %c0_i32_0 = arith.constant 0 : i32
    %c0_i32_1 = arith.constant 0 : i32
    return %c0_i32, %c0_i32_0 : i32, i32
  }
  func.func @transform_2(%arg0: i32, %arg1: i32) -> (i32, i32) {
    %c0_i32 = arith.constant 0 : i32
    %c0_i32_0 = arith.constant 0 : i32
    %c0_i32_1 = arith.constant 0 : i32
    return %c0_i32, %c0_i32_0 : i32, i32
  }
  func.func @transform_3(%arg0: i32, %arg1: i32) -> (i32, i32, i32) {
    %c0_i32 = arith.constant 0 : i32
    %c0_i32_0 = arith.constant 0 : i32
    return %arg0, %c0_i32, %arg1 : i32, i32, i32
  }
}

</mosaic_0001>

<llo_original>
// kernel: tpu_custom_call.1
$region0: #{tpu_custom_call.1}
  #allocation0 [shape = 'u32[]', space=smem, size = 0x4, offset = 0x4, fixed_abs, tag = 'smem constant byte address 0x4 - core index']
  #allocation1 [shape = 'u32[144,128]{1,0:T(1,128)}', space=vmem, size = 0x12000, scoped, tag = 'internal scratch']
  %s0 = inlined_call_operand.hbm [shape: f32[2,8,64], index: 0, kind: input, shape index: {}]
  %s1 = inlined_call_operand.vmem [shape: bf16[4,8], index: 1, kind: input, shape index: {}]
  %s2 = inlined_call_operand.vmem [shape: f32[4,1], index: 2, kind: input, shape index: {}]
  %s3 = inlined_call_operand.hbm [shape: bf16[2,4,64], index: 3, kind: output, shape index: {}]
  %s4 = sld [smem:[#allocation0]]
  $region49: #{tpu_custom_call.1} parent=0
    _
  %s6 = ssub.s32 1, %s4
  %s7 = scalar_select 0, %s6, %s4
  $region1: #{tpu_custom_call.1} parent=0
    #allocation2 [shape = 'u8[8192]{0}', space=vmem, size = 0x2000, scoped, tag = 'input window, operand 0']
    #allocation3 [shape = 's32[2]{0}', space=sflag, size = 0x8, scoped, tag = 'scoped memory for tpu_custom_call.1']
    #allocation4 [shape = 's32[2]{0}', space=sflag, size = 0x8, scoped, tag = 'scoped memory for tpu_custom_call.1']
    #allocation5 [shape = 'u8[2048]{0}', space=vmem, size = 0x800, scoped, tag = 'output window, operand 0']
    %8 = vsyncpa [#allocation3], 0
    %s9 = scalar_lea.sflag [#allocation3], 1
    %10 = vsyncpa %s9, 0
    %11 = vsyncpa [#allocation4], 0
    %s12 = scalar_lea.sflag [#allocation4], 1
    %13 = vsyncpa %s12, 0
    loop: start=0, step=1, limit=4
    $region2: #{tpu_custom_call.1} parent=1 // loop_pre_header
      _
    $region3: #{tpu_custom_call.1} parent=1 // loop_header
      %s15 = sphi 0, %s19
      %p16 = scmp.ge.s32.totalorder %s15, 4
      %s22 = sphi 0, %s34
      %s23 = sphi 0, %s30
      %s24 = sphi 0, %s22
      %s25 = sphi 0, %s23
      %s26 = sphi 0, %s24
      %s27 = sphi 0, %s25
      %s39 = sphi 0, %s41
      %s42 = sphi 0, %s39
      %s43 = sphi 0, %s42
      %s59 = sphi 0, %s43
      %s63 = sphi 0, %s63
      %s65 = sphi 0, %s63
      %s66 = sphi 0, %s65
      %s80 = sphi 0, %s66
      %s84 = sphi 0, %s84
      %s86 = sphi 0, %s84
      %s87 = sphi 0, %s86
      %s101 = sphi 0, %s87
      %s109 = sphi 0, %s111
      %s112 = sphi 0, %s109
      %s113 = sphi 0, %s112
      %s129 = sphi 0, %s113
    $region4: #{tpu_custom_call.1} parent=1 // loop_header_branch
      %18 = sbr.rel (%p16) target = $region8
    $region5: #{tpu_custom_call.1} parent=1 // loop_body
      %s20 = ssub.s32 %s15, 1
      %s21 = ssub.s32 %s15, 2
      %s28 = sadd.s32 1, %s23
      %p29 = scmp.ge.s32.totalorder %s28, 1
      %s30 = scalar_select %p29, 0, %s28
      %s31 = sadd.s32 1, %s22
      %s32 = scalar_select %p29, %s31, %s22
      %p33 = scmp.ge.s32.totalorder %s32, 2
      %s34 = scalar_select %p33, 0, %s32
      %s35 = ssub.s32 %s22, %s34
      %s36 = ssub.s32 %s23, %s30
      %s37 = sor.u32 %s35, %s36
      %p38 = scmp.eq.s32.totalorder %s37, 0
      %s40 = sadd.s32 %s39, 1
      %s41 = scalar_select %p38, %s39, %s40
      %p44 = pneg %p38
      %p45 = scmp.eq.s32.totalorder %s15, 1
      %p46 = por %p44, %p45
      %p47 = scmp.ne.s32.totalorder %s39, %s42
      %p48 = scmp.eq.s32.totalorder %s15, 0
      %p49 = por %p47, %p48
      %p50 = scmp.ne.s32.totalorder %s39, %s42
      %p51 = scmp.eq.s32.totalorder %s20, 1
      %p52 = por %p50, %p51
      %p53 = scmp.ne.s32.totalorder %s42, %s43
      %p54 = scmp.eq.s32.totalorder %s20, 0
      %p55 = por %p53, %p54
      %p56 = scmp.ne.s32.totalorder %s42, %s43
      %p57 = scmp.eq.s32.totalorder %s21, 1
      %p58 = por %p56, %p57
      %p60 = scmp.ne.s32.totalorder %s43, %s59
      %p61 = scmp.eq.s32.totalorder %s21, 0
      %p62 = por %p60, %p61
      %s64 = sadd.s32 %s63, 1
      %p67 = scmp.eq.s32.totalorder %s15, 1
      %p68 = scmp.ne.s32.totalorder %s63, %s65
      %p69 = scmp.eq.s32.totalorder %s15, 0
      %p70 = por %p68, %p69
      %p71 = scmp.ne.s32.totalorder %s63, %s65
      %p72 = scmp.eq.s32.totalorder %s20, 1
      %p73 = por %p71, %p72
      %p74 = scmp.ne.s32.totalorder %s65, %s66
      %p75 = scmp.eq.s32.totalorder %s20, 0
      %p76 = por %p74, %p75
      %p77 = scmp.ne.s32.totalorder %s65, %s66
      %p78 = scmp.eq.s32.totalorder %s21, 1
      %p79 = por %p77, %p78
      %p81 = scmp.ne.s32.totalorder %s66, %s80
      %p82 = scmp.eq.s32.totalorder %s21, 0
      %p83 = por %p81, %p82
      %s85 = sadd.s32 %s84, 1
      %p88 = scmp.eq.s32.totalorder %s15, 1
      %p89 = scmp.ne.s32.totalorder %s84, %s86
      %p90 = scmp.eq.s32.totalorder %s15, 0
      %p91 = por %p89, %p90
      %p92 = scmp.ne.s32.totalorder %s84, %s86
      %p93 = scmp.eq.s32.totalorder %s20, 1
      %p94 = por %p92, %p93
      %p95 = scmp.ne.s32.totalorder %s86, %s87
      %p96 = scmp.eq.s32.totalorder %s20, 0
      %p97 = por %p95, %p96
      %p98 = scmp.ne.s32.totalorder %s86, %s87
      %p99 = scmp.eq.s32.totalorder %s21, 1
      %p100 = por %p98, %p99
      %p102 = scmp.ne.s32.totalorder %s87, %s101
      %p103 = scmp.eq.s32.totalorder %s21, 0
      %p104 = por %p102, %p103
      %s105 = ssub.s32 %s22, %s34
      %s106 = ssub.s32 %s23, %s30
      %s107 = sor.u32 %s105, %s106
      %p108 = scmp.eq.s32.totalorder %s107, 0
      %s110 = sadd.s32 %s109, 1
      %s111 = scalar_select %p108, %s109, %s110
      %p114 = pneg %p108
      %p115 = scmp.eq.s32.totalorder %s15, 1
      %p116 = por %p114, %p115
      %p117 = scmp.ne.s32.totalorder %s109, %s112
      %p118 = scmp.eq.s32.totalorder %s15, 0
      %p119 = por %p117, %p118
      %p120 = scmp.ne.s32.totalorder %s109, %s112
      %p121 = scmp.eq.s32.totalorder %s20, 1
      %p122 = por %p120, %p121
      %p123 = scmp.ne.s32.totalorder %s112, %s113
      %p124 = scmp.eq.s32.totalorder %s20, 0
      %p125 = por %p123, %p124
      %p126 = scmp.ne.s32.totalorder %s112, %s113
      %p127 = scmp.eq.s32.totalorder %s21, 1
      %p128 = por %p126, %p127
      %p130 = scmp.ne.s32.totalorder %s113, %s129
      %p131 = scmp.eq.s32.totalorder %s21, 0
      %p132 = por %p130, %p131
      %p133 = scmp.le.s32.totalorder 1, %s15
      %p134 = scmp.lt.s32.totalorder %s15, 3
      %p135 = pnand %p133, %p134
      %p136 = pneg %p135
      // Predicated region
      $region9: #{tpu_custom_call.1} parent=5 // pred_check
        _
      $region10: #{tpu_custom_call.1} parent=5 // pred_check_branch
        %138 = sbr.rel (%p135) target = $region12
      $region11: #{tpu_custom_call.1} parent=5 // pred_region
        %s139 = ssub.s32 %s15, 1
        // Predicated region
        $region13: #{tpu_custom_call.1} parent=11 // pred_check
          %p140 = pneg %p76
        $region14: #{tpu_custom_call.1} parent=11 // pred_check_branch
          %142 = sbr.rel (%p140) target = $region16
        $region15: #{tpu_custom_call.1} parent=11 // pred_region
          _
        $region16: #{tpu_custom_call.1} parent=11 // pred_fallthru
          _
        // Predicated region
        $region17: #{tpu_custom_call.1} parent=11 // pred_check
          %p143 = pneg %p97
        $region18: #{tpu_custom_call.1} parent=11 // pred_check_branch
          %145 = sbr.rel (%p143) target = $region20
        $region19: #{tpu_custom_call.1} parent=11 // pred_region
          _
        $region20: #{tpu_custom_call.1} parent=11 // pred_fallthru
          _
      $region12: #{tpu_custom_call.1} parent=5 // pred_fallthru
        _
      %p146 = scmp.lt.s32.totalorder %s15, 2
      // Predicated region
      $region21: #{tpu_custom_call.1} parent=5 // pred_check
        %p147 = pneg %p146
      $region22: #{tpu_custom_call.1} parent=5 // pred_check_branch
        %149 = sbr.rel (%p147) target = $region24
      $region23: #{tpu_custom_call.1} parent=5 // pred_region
        // Predicated region
        $region25: #{tpu_custom_call.1} parent=23 // pred_check
          %p150 = pneg %p49
        $region26: #{tpu_custom_call.1} parent=23 // pred_check_branch
          %152 = sbr.rel (%p150) target = $region28
        $region27: #{tpu_custom_call.1} parent=23 // pred_region
          %s153 = sand.u32 %s39, 1
          %s154 = scalar_lea.sflag [#allocation3], %s153
          %s155 = sand.u32 %s39, 1
          %s156 = smul.addr %s155, 8
          %s157 = scalar_lea.vmem [#allocation2], %s156
          %s159 = ssub.s32 128, 128
          %160 = vsyncadd %s154, %s159
          %s161 = sadd.s32 %s23, %s22
          %s162 = smul.addr %s161, 128
          %s163 = scalar_lea.hbm %s0, %s162
          %s165 = sshll.u32 %s157, 4
          %s166 = int_to_ptr.vmem [resolvable:$true] %s165
          %168 = dma.hbm_to_vmem [thread:$0]  %s163, 128, %s166, %s154
        $region28: #{tpu_custom_call.1} parent=23 // pred_fallthru
          _
      $region24: #{tpu_custom_call.1} parent=5 // pred_fallthru
        _
      %p169 = scmp.le.s32.totalorder 1, %s15
      %p170 = scmp.lt.s32.totalorder %s15, 3
      %p171 = pnand %p169, %p170
      %p172 = pneg %p171
      // Predicated region
      $region29: #{tpu_custom_call.1} parent=5 // pred_check
        _
      $region30: #{tpu_custom_call.1} parent=5 // pred_check_branch
        %174 = sbr.rel (%p171) target = $region32
      $region31: #{tpu_custom_call.1} parent=5 // pred_region
        %s175 = ssub.s32 %s15, 1
        %s176 = sand.u32 %s42, 1
        %s177 = scalar_lea.sflag [#allocation3], %s176
        %s178 = sand.u32 %s42, 1
        %s179 = smul.addr %s178, 8
        %s180 = scalar_lea.vmem [#allocation2], %s179
        // Predicated region
        $region33: #{tpu_custom_call.1} parent=31 // pred_check
          %p181 = pneg %p55
        $region34: #{tpu_custom_call.1} parent=31 // pred_check_branch
          %183 = sbr.rel (%p181) target = $region36
        $region35: #{tpu_custom_call.1} parent=31 // pred_region
          %184 = dma.done %s177, 128
        $region36: #{tpu_custom_call.1} parent=31 // pred_fallthru
          _
        %s185 = sand.u32 %s42, 1
        %s186 = scalar_lea.sflag [#allocation3], %s185
        %s187 = sand.u32 %s42, 1
        %s188 = smul.addr %s187, 8
        %s189 = scalar_lea.vmem [#allocation2], %s188
        %p190 = pneg %p55
        %p191 = pneg %p52
        %p192 = pneg %p76
        %p193 = pneg %p73
        %p194 = pneg %p97
        %p195 = pneg %p94
        %p196 = pneg %p125
        %p197 = pneg %p122
        %s198 = sand.u32 %s112, 1
        %s199 = scalar_lea.sflag [#allocation4], %s198
        %s200 = sand.u32 %s112, 1
        %s201 = smul.addr %s200, 2
        %s202 = scalar_lea.vmem [#allocation5], %s201
        %v204 = vld [vmem:[%s180] sm:$0xff]
        %v205 = vpack.c.bf16 %v204, %v204
        %v206 = vld [vmem:[%s1] sm:$0x3]
        %v207 = vld [vmem:[%s2] sm:$0xf]
        %209 = vset.pattern.permute.xlu0 0
        %210 = vperm.xlu0 %209, %v207
        %v211 = vpop.permute.xlu0 %210
        %vm213 = vcmask 64512
        %v215 = vsel %vm213, %v206, 0
        %vm217 = vcmask 1043456
        %v219 = vsel %vm217, %v205, 0
        %221 = vmatprep.subr.bf16.mxu0 0
        %222 = vmatpush1.bf16.msra.mxu0 %v219
        %223 = vmatprep.subr.bf16.mxu0 0
        %224 = vmatpush1.bf16.msra.mxu0 0
        %225 = vmatprep.subr.bf16.mxu0 0
        %226 = vmatpush1.bf16.msra.mxu0 0
        %227 = vmatprep.subr.bf16.mxu0 0
        %228 = vmatpush1.bf16.msra.mxu0 0
        %229 = vmatprep.subr.bf16.mxu0 0
        %230 = vmatpush1.bf16.msra.mxu0 0
        %231 = vmatprep.subr.bf16.mxu0 0
        %232 = vmatpush1.bf16.msra.mxu0 0
        %233 = vmatprep.subr.bf16.mxu0 0
        %234 = vmatpush1.bf16.msra.mxu0 0
        %235 = vmatprep.subr.bf16.mxu0 0
        %236 = vmatpush1.bf16.msra.mxu0 0
        %237 = vmatprep.subr.bf16.mxu0 0
        %238 = vmatpush1.bf16.msra.mxu0 0
        %239 = vmatprep.subr.bf16.mxu0 0
        %240 = vmatpush1.bf16.msra.mxu0 0
        %241 = vmatprep.subr.bf16.mxu0 0
        %242 = vmatpush1.bf16.msra.mxu0 0
        %243 = vmatprep.subr.bf16.mxu0 0
        %244 = vmatpush1.bf16.msra.mxu0 0
        %245 = vmatprep.subr.bf16.mxu0 0
        %246 = vmatpush1.bf16.msra.mxu0 0
        %247 = vmatprep.subr.bf16.mxu0 0
        %248 = vmatpush1.bf16.msra.mxu0 0
        %249 = vmatprep.subr.bf16.mxu0 0
        %250 = vmatpush1.bf16.msra.mxu0 0
        %251 = vmatprep.subr.bf16.mxu0 0
        %252 = vmatpush1.bf16.msra.mxu0 0
        %253 = vmatprep.mubr.bf16.mxu0 0
        %254 = vmatmul.mubr.bf16.gmra.mrb[0].mxu0 %v215
        %v255 = vpop.f32.mrb[0].mxu0
        %v256 = vadd.f32 %v211, %v255
        %v257 = vpop.f32.mrb[0].mxu0
        %v258 = vpop.f32.mrb[0].mxu0
        %v259 = vpop.f32.mrb[0].mxu0
        %260 = vdwg.mxu0
        %v261 = vpack.c.bf16 %v256, %v256
        %vm262 = vcmask 517120
        %263 = vst.msk [vmem:[%s202] sm:$0x3] %vm262, %v261
        %s264 = sand.u32 %s112, 1
        %s265 = scalar_lea.sflag [#allocation4], %s264
        %s266 = sand.u32 %s112, 1
        %s267 = smul.addr %s266, 2
        %s268 = scalar_lea.vmem [#allocation5], %s267
        // Predicated region
        $region37: #{tpu_custom_call.1} parent=31 // pred_check
          %p269 = pneg %p122
        $region38: #{tpu_custom_call.1} parent=31 // pred_check_branch
          %271 = sbr.rel (%p269) target = $region40
        $region39: #{tpu_custom_call.1} parent=31 // pred_region
          %s273 = ssub.s32 32, 32
          %274 = vsyncadd %s265, %s273
          %s275 = sadd.s32 %s25, %s24
          %s276 = smul.addr %s275, 32
          %s277 = scalar_lea.hbm %s3, %s276
          %s279 = sshll.u32 %s268, 4
          %s280 = int_to_ptr.vmem [resolvable:$true] %s279
          %282 = dma.vmem_to_hbm [thread:$0]  %s280, 32, %s277, %s265
        $region40: #{tpu_custom_call.1} parent=31 // pred_fallthru
          _
      $region32: #{tpu_custom_call.1} parent=5 // pred_fallthru
        _
      %p283 = scmp.le.s32.totalorder 2, %s15
      // Predicated region
      $region41: #{tpu_custom_call.1} parent=5 // pred_check
        %p284 = pneg %p283
      $region42: #{tpu_custom_call.1} parent=5 // pred_check_branch
        %286 = sbr.rel (%p284) target = $region44
      $region43: #{tpu_custom_call.1} parent=5 // pred_region
        %s287 = ssub.s32 %s15, 2
        // Predicated region
        $region45: #{tpu_custom_call.1} parent=43 // pred_check
          %p288 = pneg %p128
        $region46: #{tpu_custom_call.1} parent=43 // pred_check_branch
          %290 = sbr.rel (%p288) target = $region48
        $region47: #{tpu_custom_call.1} parent=43 // pred_region
          %s291 = sand.u32 %s113, 1
          %s292 = scalar_lea.sflag [#allocation4], %s291
          %s293 = sand.u32 %s113, 1
          %s294 = smul.addr %s293, 2
          %s295 = scalar_lea.vmem [#allocation5], %s294
          %296 = dma.done %s292, 32
        $region48: #{tpu_custom_call.1} parent=43 // pred_fallthru
          _
      $region44: #{tpu_custom_call.1} parent=5 // pred_fallthru
        _
    $region6: #{tpu_custom_call.1} parent=1 // loop_footer
      %s19 = sadd.s32 1, %s15
    $region7: #{tpu_custom_call.1} parent=1 // loop_footer_branch
      %14 = sbr.rel target = $region3
    $region8: #{tpu_custom_call.1} parent=1 // loop_exit
      _
    %297 = vsyncpa [#allocation3], 1
    %s298 = scalar_lea.sflag [#allocation3], 1
    %299 = vsyncpa %s298, 1
    %300 = vsyncpa [#allocation4], 1
    %s301 = scalar_lea.sflag [#allocation4], 1
    %302 = vsyncpa %s301, 1

</llo_original>
